<compile_context>
chip_gen: v7x
topology: tpu7x:2x2x1
jax: 0.10.0
libtpu: 0.0.40
codegen_flags: <defaults>
</compile_context>

<pallas_src>
import jax
import jax.numpy as jnp
from jax import lax
from jax.experimental import pallas as pl
from jax.experimental.pallas import tpu as pltpu


def _lm_head_kernel(x_ref, w_ref, o_ref, acc_ref):
    # grid = (Mp//tm, Np//tn, Kp//tk); reduction axis k is last ("arbitrary").
    @pl.when(pl.program_id(2) == 0)
    def _():
        acc_ref[...] = jnp.zeros_like(acc_ref)

    # x tile: [tm, tk] bf16; w tile: [tn, tk] bf16 (native nn.Linear [V, H]
    # layout).  Contract both on their last (hidden) axis -> [tm, tn].
    acc_ref[...] += lax.dot_general(
        x_ref[...],
        w_ref[...],
        dimension_numbers=(((1,), (1,)), ((), ())),
        preferred_element_type=jnp.float32,
    )

    @pl.when(pl.program_id(2) == pl.num_programs(2) - 1)
    def _():
        o_ref[...] = acc_ref[...].astype(o_ref.dtype)


def _round_up(x, m):
    return (x + m - 1) // m * m


def lm_head_matmul(x2d, weight, *, out_dtype=jnp.float32):
    """x2d: [M, K]; weight: [N, K] (nn.Linear layout, no bias) -> [M, N]."""
    M, K = x2d.shape
    N, K2 = weight.shape
    assert K == K2

    # Tile selection (see header).  Worst-case VMEM w/ double-buffering:
    #   2*(tm*tk + tn*tk)*2B  +  tm*tn*4B (acc)  +  2*tm*tn*4B (out)
    #   = 2*(512*1024 + 1024*1024)*2 + 512*1024*4*3  ~= 12 MiB.
    tm = min(512, _round_up(M, 8))
    tn = min(2048 if M <= 64 else 1024, _round_up(N, 128))
    tk = min(1024, _round_up(K, 128))

    Mp = _round_up(M, tm)
    Np = _round_up(N, tn)
    Kp = _round_up(K, tk)

    # bf16 operands for the MXU (f32 accumulation in-kernel).  astype is a
    # no-op when the inputs are already bf16 (the usual serving dtype).
    xb = x2d.astype(jnp.bfloat16)
    wb = weight.astype(jnp.bfloat16)
    if (Mp, Kp) != (M, K):
        xb = jnp.pad(xb, ((0, Mp - M), (0, Kp - K)))
    if (Np, Kp) != (N, K):
        wb = jnp.pad(wb, ((0, Np - N), (0, Kp - K)))

    grid = (Mp // tm, Np // tn, Kp // tk)

    out_itemsize = jnp.dtype(out_dtype).itemsize
    cost = pl.CostEstimate(
        flops=2 * Mp * Np * Kp,
        bytes_accessed=(Mp * Kp * 2) * grid[1]      # x streamed per j-tile
        + (Np * Kp * 2) * grid[0]                   # weight streamed per i-tile
        + Mp * Np * out_itemsize,                   # logits writeback
        transcendentals=0,
    )

    out = pl.pallas_call(
        _lm_head_kernel,
        out_shape=jax.ShapeDtypeStruct((Mp, Np), out_dtype),
        grid_spec=pltpu.PrefetchScalarGridSpec(
            num_scalar_prefetch=0,
            grid=grid,
            in_specs=[
                pl.BlockSpec((tm, tk), lambda i, j, k: (i, k)),
                # weight tiled directly in its native [V, H] layout
                pl.BlockSpec((tn, tk), lambda i, j, k: (j, k)),
            ],
            out_specs=pl.BlockSpec((tm, tn), lambda i, j, k: (i, j)),
            scratch_shapes=[pltpu.VMEM((tm, tn), jnp.float32)],
        ),
        compiler_params=pltpu.CompilerParams(
            dimension_semantics=("parallel", "parallel", "arbitrary"),
            vmem_limit_bytes=48 * 1024 * 1024,  # headroom; < v7x 64 MiB VMEM
        ),
        cost_estimate=cost,
    )(xb, wb)

    if (Mp, Np) != (M, N):
        out = out[:M, :N]
    return out


@jax.jit
def lm_head_forward(hidden_states, weight):
    """hidden_states: [B, S, H]; weight: [V, H] (nn.Linear layout, no bias)."""
    B, S, H = hidden_states.shape
    V, H2 = weight.shape
    assert H == H2
    x2d = hidden_states.reshape(B * S, H)
    out = lm_head_matmul(x2d, weight, out_dtype=hidden_states.dtype)
    return out.reshape(B, S, V)


if __name__ == "__main__":
    # Small, shape-consistent synthetic config.
    batch, seq, hidden, vocab = 2, 8, 32, 256

    key = jax.random.PRNGKey(0)
    k_x, k_w = jax.random.split(key)
    hidden_states = jax.random.normal(k_x, (batch, seq, hidden), jnp.float32)
    # Deterministic synthetic lm_head weight (PyTorch nn.Linear layout [V, H]).
    weight = (
        jax.random.normal(k_w, (vocab, hidden), jnp.float32)
        / jnp.sqrt(jnp.float32(hidden))
    )

    logits = lm_head_forward(hidden_states, weight)
    logits = jax.block_until_ready(logits)

    # Reference: same bf16-operand / f32-accumulation compute as the kernel.
    ref = jnp.einsum(
        "bsh,vh->bsv",
        hidden_states.astype(jnp.bfloat16),
        weight.astype(jnp.bfloat16),
        preferred_element_type=jnp.float32,
    )
    assert logits.shape == (batch, seq, vocab)
    assert jnp.allclose(logits, ref, atol=2e-2, rtol=2e-2)

    print("KERNEL_OK")
</pallas_src>

<mosaic_0001>
module attributes {stable_mosaic.version = 11 : i64} {
  func.func @_lm_head_kernel(%arg0: i32, %arg1: i32, %arg2: i32, %arg3: memref<16x128xbf16, #tpu.memory_space<vmem>>, %arg4: memref<256x128xbf16, #tpu.memory_space<vmem>>, %arg5: memref<16x256xf32, #tpu.memory_space<vmem>>, %arg6: memref<16x256xf32, #tpu.memory_space<vmem>>) attributes {dimension_semantics = [#tpu.dimension_semantics<parallel>, #tpu.dimension_semantics<parallel>, #tpu.dimension_semantics<arbitrary>], iteration_bounds = array<i64: 1, 1, 1>, scalar_prefetch = 0 : i64, scratch_operands = 1 : i64, tpu.core_type = #tpu.core_type<tc>, window_params = [{transform_indices = @transform_0, window_bounds = array<i64: 16, 128>}, {transform_indices = @transform_1, window_bounds = array<i64: 256, 128>}, {transform_indices = @transform_2, window_bounds = array<i64: 16, 256>}]} {
    %c0_i32 = arith.constant 0 : i32
    %0 = arith.cmpi eq, %arg2, %c0_i32 : i32
    %1 = arith.extui %0 : i1 to i32
    %c0_i32_0 = arith.constant 0 : i32
    %2 = arith.cmpi ne, %1, %c0_i32_0 : i32
    scf.if %2 {
      %cst_10 = arith.constant 0.000000e+00 : f32
      %12 = vector.broadcast %cst_10 : f32 to vector<16x256xf32>
      %c0_11 = arith.constant 0 : index
      %c0_12 = arith.constant 0 : index
      %13 = vector.load %arg6[%c0_11, %c0_12] : memref<16x256xf32, #tpu.memory_space<vmem>>, vector<16x256xf32>
      tpu.vector_store %arg6[%c0_11, %c0_12], %12 {strides = array<i32>} : memref<16x256xf32, #tpu.memory_space<vmem>>, vector<16x256xf32>,
    } else {
    }
    %c0 = arith.constant 0 : index
    %c0_1 = arith.constant 0 : index
    %3 = vector.load %arg6[%c0, %c0_1] : memref<16x256xf32, #tpu.memory_space<vmem>>, vector<16x256xf32>
    %c0_2 = arith.constant 0 : index
    %c0_3 = arith.constant 0 : index
    %4 = vector.load %arg3[%c0_2, %c0_3] : memref<16x128xbf16, #tpu.memory_space<vmem>>, vector<16x128xbf16>
    %c0_4 = arith.constant 0 : index
    %c0_5 = arith.constant 0 : index
    %5 = vector.load %arg4[%c0_4, %c0_5] : memref<256x128xbf16, #tpu.memory_space<vmem>>, vector<256x128xbf16>
    %cst = arith.constant dense<0.000000e+00> : vector<16x256xf32>
    %6 = tpu.matmul %4, %5, %cst {dimension_numbers = #tpu.dot_dimension_numbers<[1], [1], [0], [0], [0, 0, 1, 0], [], []>} : vector<16x128xbf16>, vector<256x128xbf16>, vector<16x256xf32> -> vector<16x256xf32>
    %7 = arith.addf %3, %6 : vector<16x256xf32>
    %c0_6 = arith.constant 0 : index
    %c0_7 = arith.constant 0 : index
    %8 = vector.load %arg6[%c0_6, %c0_7] : memref<16x256xf32, #tpu.memory_space<vmem>>, vector<16x256xf32>
    tpu.vector_store %arg6[%c0_6, %c0_7], %7 {strides = array<i32>} : memref<16x256xf32, #tpu.memory_space<vmem>>, vector<16x256xf32>,
    %c0_i32_8 = arith.constant 0 : i32
    %9 = arith.cmpi eq, %arg2, %c0_i32_8 : i32
    %10 = arith.extui %9 : i1 to i32
    %c0_i32_9 = arith.constant 0 : i32
    %11 = arith.cmpi ne, %10, %c0_i32_9 : i32
    scf.if %11 {
      %c0_10 = arith.constant 0 : index
      %c0_11 = arith.constant 0 : index
      %12 = vector.load %arg6[%c0_10, %c0_11] : memref<16x256xf32, #tpu.memory_space<vmem>>, vector<16x256xf32>
      %c0_12 = arith.constant 0 : index
      %c0_13 = arith.constant 0 : index
      %13 = vector.load %arg5[%c0_12, %c0_13] : memref<16x256xf32, #tpu.memory_space<vmem>>, vector<16x256xf32>
      tpu.vector_store %arg5[%c0_12, %c0_13], %12 {strides = array<i32>} : memref<16x256xf32, #tpu.memory_space<vmem>>, vector<16x256xf32>,
    } else {
    }
    return
  }
  func.func @transform_0(%arg0: i32, %arg1: i32, %arg2: i32) -> (i32, i32) {
    %c0_i32 = arith.constant 0 : i32
    return %arg0, %arg2 : i32, i32
  }
  func.func @transform_1(%arg0: i32, %arg1: i32, %arg2: i32) -> (i32, i32) {
    %c0_i32 = arith.constant 0 : i32
    return %arg1, %arg2 : i32, i32
  }
  func.func @transform_2(%arg0: i32, %arg1: i32, %arg2: i32) -> (i32, i32) {
    %c0_i32 = arith.constant 0 : i32
    return %arg0, %arg1 : i32, i32
  }
}

</mosaic_0001>

<llo_original>
// kernel: lm_head_forward.1
$region0: #{lm_head_forward.1}
  #allocation0 [shape = 'u32[]', space=smem, size = 0x4, offset = 0x4, fixed_abs, tag = 'smem constant byte address 0x4 - core index']
  #allocation1 [shape = 'u32[144,128]{1,0:T(1,128)}', space=vmem, size = 0x12000, scoped, tag = 'internal scratch']
  #allocation2 [shape = 'f32[16,256]{1,0:T(8,128)}', space=vmem, size = 0x4000, scoped, tag = 'scratch operand']
  %s0 = inlined_call_operand.vmem [shape: bf16[16,128], index: 0, kind: input, shape index: {}]
  %s1 = inlined_call_operand.vmem [shape: bf16[256,128], index: 1, kind: input, shape index: {}]
  %s2 = inlined_call_operand.hbm [shape: f32[16,256], index: 2, kind: output, shape index: {}]
  %s3 = sld [smem:[#allocation0]]
  $region26: #{lm_head_forward.1} parent=0
    _
  %s5 = ssub.s32 1, %s3
  %s6 = scalar_select 0, %s5, %s3
  $region1: #{lm_head_forward.1} parent=0
    #allocation3 [shape = 'u8[16384]{0}', space=vmem, size = 0x4000, scoped, tag = 'output window, operand 0, single buffered']
    #allocation4 [shape = 's32[1]{0}', space=sflag, size = 0x4, scoped, tag = 'scoped memory for lm_head_forward.1']
    %7 = vsyncpa [#allocation4], 0
    // Predicated region
    $region2: #{lm_head_forward.1} parent=1 // pred_check
      _
    $region3: #{lm_head_forward.1} parent=1 // pred_check_branch
      %9 = sbr.rel (0) target = $region5
    $region4: #{lm_head_forward.1} parent=1 // pred_region
      _
    $region5: #{lm_head_forward.1} parent=1 // pred_fallthru
      _
    // Predicated region
    $region6: #{lm_head_forward.1} parent=1 // pred_check
      _
    $region7: #{lm_head_forward.1} parent=1 // pred_check_branch
      %11 = sbr.rel (0) target = $region9
    $region8: #{lm_head_forward.1} parent=1 // pred_region
      _
    $region9: #{lm_head_forward.1} parent=1 // pred_fallthru
      _
    %p13 = scmp.eq.s32.totalorder 0, 0
    // Predicated region
    $region10: #{lm_head_forward.1} parent=1 // pred_check
      %p14 = pneg %p13
    $region11: #{lm_head_forward.1} parent=1 // pred_check_branch
      %16 = sbr.rel (%p14) target = $region13
    $region12: #{lm_head_forward.1} parent=1 // pred_region
      %17 = vst [vmem:[#allocation2] sm:$0xff] 0.0
      %18 = vst [vmem:[#allocation2 + $0x8] sm:$0xff] 0.0
      %19 = vst [vmem:[#allocation2 + $0x10] sm:$0xff] 0.0
      %20 = vst [vmem:[#allocation2 + $0x18] sm:$0xff] 0.0
    $region13: #{lm_head_forward.1} parent=1 // pred_fallthru
      _
    %v21 = vld [vmem:[#allocation2] sm:$0xff]
    %v22 = vld [vmem:[#allocation2 + $0x8] sm:$0xff]
    %v23 = vld [vmem:[#allocation2 + $0x10] sm:$0xff]
    %v24 = vld [vmem:[#allocation2 + $0x18] sm:$0xff]
    %v25 = vld [vmem:[%s0] sm:$0xf]
    %v26 = vld [vmem:[%s0 + $0x4] sm:$0xf]
    %v27 = vld [vmem:[%s1] sm:$0xf]
    %v28 = vld [vmem:[%s1 + $0x4] sm:$0xf]
    %v29 = vld [vmem:[%s1 + $0x8] sm:$0xf]
    %v30 = vld [vmem:[%s1 + $0xc] sm:$0xf]
    %v31 = vld [vmem:[%s1 + $0x10] sm:$0xf]
    %v32 = vld [vmem:[%s1 + $0x14] sm:$0xf]
    %v33 = vld [vmem:[%s1 + $0x18] sm:$0xf]
    %v34 = vld [vmem:[%s1 + $0x1c] sm:$0xf]
    %v35 = vld [vmem:[%s1 + $0x20] sm:$0xf]
    %v36 = vld [vmem:[%s1 + $0x24] sm:$0xf]
    %v37 = vld [vmem:[%s1 + $0x28] sm:$0xf]
    %v38 = vld [vmem:[%s1 + $0x2c] sm:$0xf]
    %v39 = vld [vmem:[%s1 + $0x30] sm:$0xf]
    %v40 = vld [vmem:[%s1 + $0x34] sm:$0xf]
    %v41 = vld [vmem:[%s1 + $0x38] sm:$0xf]
    %v42 = vld [vmem:[%s1 + $0x3c] sm:$0xf]
    %v43 = vld [vmem:[%s1 + $0x40] sm:$0xf]
    %v44 = vld [vmem:[%s1 + $0x44] sm:$0xf]
    %v45 = vld [vmem:[%s1 + $0x48] sm:$0xf]
    %v46 = vld [vmem:[%s1 + $0x4c] sm:$0xf]
    %v47 = vld [vmem:[%s1 + $0x50] sm:$0xf]
    %v48 = vld [vmem:[%s1 + $0x54] sm:$0xf]
    %v49 = vld [vmem:[%s1 + $0x58] sm:$0xf]
    %v50 = vld [vmem:[%s1 + $0x5c] sm:$0xf]
    %v51 = vld [vmem:[%s1 + $0x60] sm:$0xf]
    %v52 = vld [vmem:[%s1 + $0x64] sm:$0xf]
    %v53 = vld [vmem:[%s1 + $0x68] sm:$0xf]
    %v54 = vld [vmem:[%s1 + $0x6c] sm:$0xf]
    %v55 = vld [vmem:[%s1 + $0x70] sm:$0xf]
    %v56 = vld [vmem:[%s1 + $0x74] sm:$0xf]
    %v57 = vld [vmem:[%s1 + $0x78] sm:$0xf]
    %v58 = vld [vmem:[%s1 + $0x7c] sm:$0xf]
    %v61 = vunpack.c.l.b16 %v25
    %v62 = vunpack.c.l.b16 %v26
    %v63 = vpack.c.b16 %v62, %v61
    %v97 = vunpack.c.l.b16 %v27
    %v98 = vunpack.c.l.b16 %v28
    %v99 = vunpack.c.l.b16 %v29
    %v100 = vunpack.c.l.b16 %v30
    %v101 = vunpack.c.l.b16 %v31
    %v102 = vunpack.c.l.b16 %v32
    %v103 = vunpack.c.l.b16 %v33
    %v104 = vunpack.c.l.b16 %v34
    %v105 = vunpack.c.l.b16 %v35
    %v106 = vunpack.c.l.b16 %v36
    %v107 = vunpack.c.l.b16 %v37
    %v108 = vunpack.c.l.b16 %v38
    %v109 = vunpack.c.l.b16 %v39
    %v110 = vunpack.c.l.b16 %v40
    %v111 = vunpack.c.l.b16 %v41
    %v112 = vunpack.c.l.b16 %v42
    %v113 = vunpack.c.l.b16 %v43
    %v114 = vunpack.c.l.b16 %v44
    %v115 = vunpack.c.l.b16 %v45
    %v116 = vunpack.c.l.b16 %v46
    %v117 = vunpack.c.l.b16 %v47
    %v118 = vunpack.c.l.b16 %v48
    %v119 = vunpack.c.l.b16 %v49
    %v120 = vunpack.c.l.b16 %v50
    %v121 = vunpack.c.l.b16 %v51
    %v122 = vunpack.c.l.b16 %v52
    %v123 = vunpack.c.l.b16 %v53
    %v124 = vunpack.c.l.b16 %v54
    %v125 = vunpack.c.l.b16 %v55
    %v126 = vunpack.c.l.b16 %v56
    %v127 = vunpack.c.l.b16 %v57
    %v128 = vunpack.c.l.b16 %v58
    %v129 = vpack.c.b16 %v98, %v97
    %v130 = vpack.c.b16 %v100, %v99
    %v131 = vpack.c.b16 %v102, %v101
    %v132 = vpack.c.b16 %v104, %v103
    %v133 = vpack.c.b16 %v106, %v105
    %v134 = vpack.c.b16 %v108, %v107
    %v135 = vpack.c.b16 %v110, %v109
    %v136 = vpack.c.b16 %v112, %v111
    %v137 = vpack.c.b16 %v114, %v113
    %v138 = vpack.c.b16 %v116, %v115
    %v139 = vpack.c.b16 %v118, %v117
    %v140 = vpack.c.b16 %v120, %v119
    %v141 = vpack.c.b16 %v122, %v121
    %v142 = vpack.c.b16 %v124, %v123
    %v143 = vpack.c.b16 %v126, %v125
    %v144 = vpack.c.b16 %v128, %v127
    %161 = vmatprep.subr.bf16.mxu0 0
    %162 = vmatpush1.bf16.xpose.msra.mxu0 %v129
    %163 = vmatprep.subr.bf16.mxu0 0
    %164 = vmatpush1.bf16.xpose.msra.mxu0 %v130
    %165 = vmatprep.subr.bf16.mxu0 0
    %166 = vmatpush1.bf16.xpose.msra.mxu0 %v131
    %167 = vmatprep.subr.bf16.mxu0 0
    %168 = vmatpush1.bf16.xpose.msra.mxu0 %v132
    %169 = vmatprep.subr.bf16.mxu0 0
    %170 = vmatpush1.bf16.xpose.msra.mxu0 %v133
    %171 = vmatprep.subr.bf16.mxu0 0
    %172 = vmatpush1.bf16.xpose.msra.mxu0 %v134
    %173 = vmatprep.subr.bf16.mxu0 0
    %174 = vmatpush1.bf16.xpose.msra.mxu0 %v135
    %175 = vmatprep.subr.bf16.mxu0 0
    %176 = vmatpush1.bf16.xpose.msra.mxu0 %v136
    %177 = vmatprep.subr.bf16.mxu0 0
    %178 = vmatpush1.bf16.xpose.msra.mxu0 %v137
    %179 = vmatprep.subr.bf16.mxu0 0
    %180 = vmatpush1.bf16.xpose.msra.mxu0 %v138
    %181 = vmatprep.subr.bf16.mxu0 0
    %182 = vmatpush1.bf16.xpose.msra.mxu0 %v139
    %183 = vmatprep.subr.bf16.mxu0 0
    %184 = vmatpush1.bf16.xpose.msra.mxu0 %v140
    %185 = vmatprep.subr.bf16.mxu0 0
    %186 = vmatpush1.bf16.xpose.msra.mxu0 %v141
    %187 = vmatprep.subr.bf16.mxu0 0
    %188 = vmatpush1.bf16.xpose.msra.mxu0 %v142
    %189 = vmatprep.subr.bf16.mxu0 0
    %190 = vmatpush1.bf16.xpose.msra.mxu0 %v143
    %191 = vmatprep.subr.bf16.mxu0 0
    %192 = vmatpush1.bf16.xpose.msra.mxu0 %v144
    %193 = vmatprep.mubr.bf16.mxu0 0
    %194 = vmatmul.mubr.bf16.gmra.mrb[0].mxu0 %v63
    %v195 = vpop.f32.mrb[0].mxu0
    %v196 = vadd.f32 0.0, %v195
    %v197 = vpop.f32.mrb[0].mxu0
    %v198 = vadd.f32 0.0, %v197
    %v199 = vpop.f32.mrb[0].mxu0
    %v200 = vadd.f32 0.0, %v199
    %v201 = vpop.f32.mrb[0].mxu0
    %v202 = vadd.f32 0.0, %v201
    %203 = vdwg.mxu0
    %v204 = vadd.f32 %v21, %v196
    %v205 = vadd.f32 %v22, %v198
    %v206 = vadd.f32 %v23, %v200
    %v207 = vadd.f32 %v24, %v202
    %208 = vst [vmem:[#allocation2] sm:$0xff] %v204
    %209 = vst [vmem:[#allocation2 + $0x8] sm:$0xff] %v205
    %210 = vst [vmem:[#allocation2 + $0x10] sm:$0xff] %v206
    %211 = vst [vmem:[#allocation2 + $0x18] sm:$0xff] %v207
    // Predicated region
    $region14: #{lm_head_forward.1} parent=1 // pred_check
      %p212 = pneg %p13
    $region15: #{lm_head_forward.1} parent=1 // pred_check_branch
      %214 = sbr.rel (%p212) target = $region17
    $region16: #{lm_head_forward.1} parent=1 // pred_region
      %v215 = vld [vmem:[#allocation2] sm:$0xff]
      %v216 = vld [vmem:[#allocation2 + $0x8] sm:$0xff]
      %v217 = vld [vmem:[#allocation2 + $0x10] sm:$0xff]
      %v218 = vld [vmem:[#allocation2 + $0x18] sm:$0xff]
      %219 = vst [vmem:[#allocation3] sm:$0xff] %v215
      %220 = vst [vmem:[#allocation3 + $0x8] sm:$0xff] %v216
      %221 = vst [vmem:[#allocation3 + $0x10] sm:$0xff] %v217
      %222 = vst [vmem:[#allocation3 + $0x18] sm:$0xff] %v218
    $region17: #{lm_head_forward.1} parent=1 // pred_fallthru
      _
    // Predicated region
    $region18: #{lm_head_forward.1} parent=1 // pred_check
      _
    $region19: #{lm_head_forward.1} parent=1 // pred_check_branch
      %224 = sbr.rel (0) target = $region21
    $region20: #{lm_head_forward.1} parent=1 // pred_region
      %s226 = ssub.s32 512, 512
      %227 = vsyncadd [#allocation4], %s226
      %s228 = sshll.u32 [#allocation3], 4
      %s229 = int_to_ptr.vmem [resolvable:$true] %s228
      %234 = dma.vmem_to_hbm [thread:$0]  %s229, 512, %s2, [#allocation4], 256, 256, 16
    $region21: #{lm_head_forward.1} parent=1 // pred_fallthru
      _
    // Predicated region
    $region22: #{lm_head_forward.1} parent=1 // pred_check
      _
    $region23: #{lm_head_forward.1} parent=1 // pred_check_branch
      %236 = sbr.rel (0) target = $region25
    $region24: #{lm_head_forward.1} parent=1 // pred_region
      %237 = dma.done [#allocation4], 512
    $region25: #{lm_head_forward.1} parent=1 // pred_fallthru
      _
    %238 = vsyncpa [#allocation4], 1

</llo_original>
